<compile_context>
chip_gen: v7x
topology: tpu7x:2x2x1
jax: 0.10.0
libtpu: 0.0.40
codegen_flags: <defaults>
</compile_context>

<pallas_src>
import jax
import jax.numpy as jnp
from jax.experimental import pallas as pl
from jax.experimental.pallas import tpu as pltpu

_LANES = 128
_MAX_BLOCK_ROWS = 2048  # 2048 * 128 * 4 B = 1 MiB per output block (double-buffered: 2 MiB)


def _single_variance_kernel(var_ref, o_ref):
    # var_ref : SMEM (1,)              float32  -- the scalar learned parameter
    # o_ref   : VMEM (block_rows, 128) float32  -- lane-dense output slab block
    s = jnp.exp(var_ref[0] * 10.0)  # scalar exp (EUP), broadcast in the splat store
    o_ref[...] = jnp.full(o_ref.shape, s, o_ref.dtype)


def _round_up(n, m):
    return ((n + m - 1) // m) * m


def single_variance_forward(x, variance):
    """x: (B, ...) array (values unused; only len(x) matters); variance: scalar.

    Returns (B, 1) float32 == ones([B, 1]) * exp(variance * 10.0).
    """
    B = x.shape[0]
    var_arr = jnp.asarray(variance, dtype=jnp.float32).reshape((1,))

    # Lane-dense slab sizing: need at least B f32 elements, 128 per row.
    rows_needed = pl.cdiv(B, _LANES)
    block_rows = min(_MAX_BLOCK_ROWS, _round_up(rows_needed, 8))  # multiple of 8 sublanes
    padded_rows = _round_up(rows_needed, block_rows)
    grid = (padded_rows // block_rows,)

    slab = pl.pallas_call(
        _single_variance_kernel,
        out_shape=jax.ShapeDtypeStruct((padded_rows, _LANES), jnp.float32),
        grid_spec=pltpu.PrefetchScalarGridSpec(
            num_scalar_prefetch=1,          # variance scalar -> SMEM
            grid=grid,
            in_specs=[],                    # no tensor inputs: x is never read
            out_specs=pl.BlockSpec((block_rows, _LANES), lambda i, var: (i, 0)),
        ),
        compiler_params=pltpu.CompilerParams(
            dimension_semantics=("parallel",),
        ),
        cost_estimate=pl.CostEstimate(
            flops=0,
            transcendentals=1,
            bytes_accessed=4 * padded_rows * _LANES,
        ),
    )(var_arr)

    # Reshape the lane-dense slab to the module's (B, 1) output.
    return slab.reshape(-1)[:B].reshape(B, 1)


if __name__ == "__main__":
    key = jax.random.PRNGKey(0)

    # Deterministic parameter init (matches nn.Parameter(torch.tensor(init_val)))
    init_val = 0.3
    variance = jnp.float32(init_val)

    # Small example input consistent with forward(): x of shape (B, 3)
    B = 8
    x = jax.random.normal(key, (B, 3), dtype=jnp.float32)

    out = single_variance_forward(x, variance)
    out = jax.block_until_ready(out)

    # Reference check against the exact PyTorch semantics
    ref = jnp.ones((B, 1), dtype=jnp.float32) * jnp.exp(variance * 10.0)
    assert out.shape == (B, 1), out.shape
    assert out.dtype == jnp.float32, out.dtype
    assert jnp.allclose(out, ref, rtol=1e-6, atol=1e-6), (out, ref)

    print("KERNEL_OK")
</pallas_src>

<mosaic_0001>
module attributes {stable_mosaic.version = 11 : i64} {
  func.func @_single_variance_kernel(%arg0: i32, %arg1: memref<1xf32, #tpu.memory_space<smem>>, %arg2: memref<8x128xf32, #tpu.memory_space<vmem>>) attributes {dimension_semantics = [#tpu.dimension_semantics<parallel>], iteration_bounds = array<i64: 1>, scalar_prefetch = 1 : i64, scratch_operands = 0 : i64, tpu.core_type = #tpu.core_type<tc>, window_params = [{transform_indices = @transform_0, window_bounds = array<i64: 8, 128>}]} {
    %c0 = arith.constant 0 : index
    %0 = memref.load %arg1[%c0] : memref<1xf32, #tpu.memory_space<smem>>
    %cst = arith.constant 1.000000e+01 : f32
    %1 = arith.mulf %0, %cst : f32
    %2 = math.exp %1 : f32
    %3 = vector.broadcast %2 : f32 to vector<8x128xf32>
    %c0_0 = arith.constant 0 : index
    %c0_1 = arith.constant 0 : index
    %4 = vector.load %arg2[%c0_0, %c0_1] : memref<8x128xf32, #tpu.memory_space<vmem>>, vector<8x128xf32>
    tpu.vector_store %arg2[%c0_0, %c0_1], %3 {strides = array<i32>} : memref<8x128xf32, #tpu.memory_space<vmem>>, vector<8x128xf32>,
    return
  }
  func.func @transform_0(%arg0: i32, %arg1: memref<1xf32, #tpu.memory_space<smem>>) -> (i32, i32) {
    %c0_i32 = arith.constant 0 : i32
    %c0_i32_0 = arith.constant 0 : i32
    return %arg0, %c0_i32 : i32, i32
  }
}

</mosaic_0001>

<llo_original>
// kernel: tpu_custom_call.1
$region0: #{tpu_custom_call.1}
  #allocation0 [shape = 'u32[]', space=smem, size = 0x4, offset = 0x4, fixed_abs, tag = 'smem constant byte address 0x4 - core index']
  #allocation1 [shape = 'u32[144,128]{1,0:T(1,128)}', space=vmem, size = 0x12000, scoped, tag = 'internal scratch']
  #allocation2 [shape = 's32[1]{0}', space=sflag, size = 0x4, scoped, tag = 'scoped memory for tpu_custom_call.1']
  #allocation3 [shape = 'f32[1]{0:T(128)S(6)}', space=smem, size = 0x200, scoped, tag = 'prefetched SMEM operand 0']
  %s0 = inlined_call_operand.<no memory space> [shape: f32[1], index: 0, kind: input, shape index: {}]
  %s1 = inlined_call_operand.hbm [shape: f32[8,128], index: 1, kind: output, shape index: {}]
  %s2 = sld [smem:[#allocation0]]
  $region10: #{tpu_custom_call.1} parent=0
    _
  %s4 = ssub.s32 1, %s2
  %s5 = scalar_select 0, %s4, %s2
  %6 = sst [smem:[#allocation3]] %s0
  $region1: #{tpu_custom_call.1} parent=0
    #allocation4 [shape = 'u8[4096]{0}', space=vmem, size = 0x1000, scoped, tag = 'output window, operand 0, single buffered']
    #allocation5 [shape = 's32[1]{0}', space=sflag, size = 0x4, scoped, tag = 'scoped memory for tpu_custom_call.1']
    %7 = vsyncpa [#allocation5], 0
    %s8 = sld [smem:[#allocation3]]
    %s9 = smul.f32 %s8, 10.0
    %v10 = vstv %s9
    %v11 = vmul.f32 %v10, 1.442695
    %v12 = vpow.pop %v11
    %s13 = vtos %v12
    %v14 = vstv %s13
    %15 = vst [vmem:[#allocation4] sm:$0xff] %v14
    // Predicated region
    $region2: #{tpu_custom_call.1} parent=1 // pred_check
      _
    $region3: #{tpu_custom_call.1} parent=1 // pred_check_branch
      %17 = sbr.rel (0) target = $region5
    $region4: #{tpu_custom_call.1} parent=1 // pred_region
      %s19 = ssub.s32 128, 128
      %20 = vsyncadd [#allocation5], %s19
      %s22 = sshll.u32 [#allocation4], 4
      %s23 = int_to_ptr.vmem [resolvable:$true] %s22
      %25 = dma.vmem_to_hbm [thread:$0]  %s23, 128, %s1, [#allocation5]
    $region5: #{tpu_custom_call.1} parent=1 // pred_fallthru
      _
    // Predicated region
    $region6: #{tpu_custom_call.1} parent=1 // pred_check
      _
    $region7: #{tpu_custom_call.1} parent=1 // pred_check_branch
      %27 = sbr.rel (0) target = $region9
    $region8: #{tpu_custom_call.1} parent=1 // pred_region
      %28 = dma.done [#allocation5], 128
    $region9: #{tpu_custom_call.1} parent=1 // pred_fallthru
      _
    %29 = vsyncpa [#allocation5], 1

</llo_original>
